<compile_context>
chip_gen: v5e
topology: v5e:2x2
jax: 0.10.0
libtpu: 0.0.40
codegen_flags: <defaults>
</compile_context>

<pallas_src>
import jax
import jax.numpy as jnp
from jax.experimental import pallas as pl
from jax.experimental.pallas import tpu as pltpu


def _make_lambda_kernel(lambd):
    def kernel(x_ref, o_ref):
        # Elementwise lambda over the whole VMEM tile (VPU work). Rows in the
        # padded region of a partial final block hold stale data; their writes
        # are masked by the pipeline, so any inf/NaN there is discarded.
        o_ref[...] = lambd(x_ref[...]).astype(o_ref.dtype)
    return kernel


def _round_up(x, m):
    return ((x + m - 1) // m) * m


def _pick_lane(n, sub):
    """Lane-dense width (multiple of 128, <= 1024). Prefer widths that divide
    n exactly (no pad / no output slice) and give at least `sub` rows."""
    for lane in (1024, 512, 256, 128):
        if n % lane == 0 and n // lane >= sub:
            return lane
    if n % 128 == 0:
        return 128
    lane = 1024
    while lane > 128 and n < lane * sub:
        lane //= 2
    return lane


def _pick_row_tile(rows, lane, sub, in_bytes, out_bytes):
    """Row tile so that one block's combined (input + output) footprint is
    ~8 MiB -> ~16 MiB live when double-buffered. Budget uses the true
    per-element byte count, not 2x the wider dtype."""
    target_block_bytes = 8 << 20
    row_tile = (target_block_bytes // (lane * (in_bytes + out_bytes))) // sub * sub
    row_tile = max(sub, row_tile)
    # Never bigger than the (sublane-rounded) data; partial last block is OK.
    return min(row_tile, _round_up(rows, sub))


def lambda_module(x, lambd):
    """Pallas TPU implementation of LambdaModule(lambd).forward(x) for
    elementwise (shape-preserving) lambdas; the lambda may change dtype
    (e.g. uint8 image -> f32 normalization)."""
    orig_shape = x.shape
    n = x.size

    out_struct = jax.eval_shape(lambd, jax.ShapeDtypeStruct(x.shape, x.dtype))
    if out_struct.shape != tuple(orig_shape) or n == 0:
        # Shape-changing lambda (or empty input): cannot be tiled elementwise
        # -> plain JAX preserves semantics exactly.
        return lambd(x)
    out_dtype = out_struct.dtype

    in_bytes = jnp.dtype(x.dtype).itemsize
    out_bytes = jnp.dtype(out_dtype).itemsize
    narrow = min(in_bytes, out_bytes)
    sub = {1: 32, 2: 16}.get(narrow, 8)       # packed-sublane multiple

    lane = _pick_lane(n, sub)
    rows = pl.cdiv(n, lane)
    padded_n = rows * lane

    flat = x.reshape(-1)
    if padded_n != n:
        # <= lane-1 extra elements; edge-replicated so singular lambdas
        # (log, 1/x) stay finite in the (discarded) padded region.
        flat = jnp.pad(flat, (0, padded_n - n), mode="edge")
    x2 = flat.reshape(rows, lane)

    row_tile = _pick_row_tile(rows, lane, sub, in_bytes, out_bytes)
    grid = pl.cdiv(rows, row_tile)            # partial last block allowed

    cost = pl.CostEstimate(
        flops=2 * padded_n,                   # ~a couple of VPU ops per element
        transcendentals=0,
        bytes_accessed=padded_n * (in_bytes + out_bytes),
    )

    out2 = pl.pallas_call(
        _make_lambda_kernel(lambd),
        out_shape=jax.ShapeDtypeStruct((rows, lane), out_dtype),
        grid_spec=pltpu.PrefetchScalarGridSpec(
            num_scalar_prefetch=0,
            grid=(grid,),
            in_specs=[pl.BlockSpec((row_tile, lane), lambda i: (i, 0))],
            out_specs=pl.BlockSpec((row_tile, lane), lambda i: (i, 0)),
        ),
        compiler_params=pltpu.CompilerParams(
            dimension_semantics=("parallel",),   # megacore sharding on v7x
            vmem_limit_bytes=32 * 1024 * 1024,   # raise v5e's 16 MiB default;
                                                 # still half of v7x's 64 MiB
        ),
        cost_estimate=cost,
    )(x2)

    if padded_n != n:
        return out2.reshape(-1)[:n].reshape(orig_shape)
    return out2.reshape(orig_shape)


if __name__ == "__main__":
    # Typical data_transforms lambda: scale [0, 255] -> [-1, 1].
    lambd = lambda t: t / 255.0 * 2.0 - 1.0

    key = jax.random.PRNGKey(0)
    x = jax.random.uniform(key, (2, 4, 16, 16), dtype=jnp.float32) * 255.0

    y = jax.block_until_ready(lambda_module(x, lambd))
    y_ref = lambd(x)
    assert y.shape == x.shape and y.dtype == y_ref.dtype
    assert jnp.allclose(y, y_ref, atol=1e-6, rtol=1e-6)

    # Ragged size + dtype-widening lambda: exercises the pad-to-lane path,
    # packed-sublane tiling and the combined-footprint block sizing (same
    # path handles uint8 image -> f32 normalization lambdas).
    k2 = jax.random.fold_in(key, 1)
    xb = (jax.random.uniform(k2, (3, 3, 30, 30), dtype=jnp.float32) * 255.0
          ).astype(jnp.bfloat16)
    lambd_cast = lambda t: t.astype(jnp.float32) / 255.0 * 2.0 - 1.0
    yb = jax.block_until_ready(lambda_module(xb, lambd_cast))
    yb_ref = lambd_cast(xb)
    assert yb.shape == xb.shape and yb.dtype == yb_ref.dtype
    assert jnp.allclose(yb, yb_ref, atol=1e-6, rtol=1e-6)

    print("KERNEL_OK")
</pallas_src>

<mosaic_0001>
module attributes {stable_mosaic.version = 11 : i64} {
  func.func @kernel(%arg0: i32, %arg1: memref<8x256xf32, #tpu.memory_space<vmem>>, %arg2: memref<8x256xf32, #tpu.memory_space<vmem>>) attributes {dimension_semantics = [#tpu.dimension_semantics<parallel>], iteration_bounds = array<i64: 1>, scalar_prefetch = 0 : i64, scratch_operands = 0 : i64, tpu.core_type = #tpu.core_type<tc>, window_params = [{transform_indices = @transform_0, window_bounds = array<i64: 8, 256>}, {transform_indices = @transform_1, window_bounds = array<i64: 8, 256>}]} {
    %c0 = arith.constant 0 : index
    %c0_0 = arith.constant 0 : index
    %0 = vector.load %arg1[%c0, %c0_0] : memref<8x256xf32, #tpu.memory_space<vmem>>, vector<8x256xf32>
    %cst = arith.constant 2.550000e+02 : f32
    %1 = vector.broadcast %cst : f32 to vector<8x256xf32>
    %2 = arith.divf %0, %1 : vector<8x256xf32>
    %cst_1 = arith.constant 2.000000e+00 : f32
    %3 = vector.broadcast %cst_1 : f32 to vector<8x256xf32>
    %4 = arith.mulf %2, %3 : vector<8x256xf32>
    %cst_2 = arith.constant 1.000000e+00 : f32
    %5 = vector.broadcast %cst_2 : f32 to vector<8x256xf32>
    %6 = arith.subf %4, %5 : vector<8x256xf32>
    %c0_3 = arith.constant 0 : index
    %c0_4 = arith.constant 0 : index
    %7 = vector.load %arg2[%c0_3, %c0_4] : memref<8x256xf32, #tpu.memory_space<vmem>>, vector<8x256xf32>
    tpu.vector_store %arg2[%c0_3, %c0_4], %6 {strides = array<i32>} : memref<8x256xf32, #tpu.memory_space<vmem>>, vector<8x256xf32>,
    return
  }
  func.func @transform_0(%arg0: i32) -> (i32, i32) {
    %c0_i32 = arith.constant 0 : i32
    %c0_i32_0 = arith.constant 0 : i32
    return %arg0, %c0_i32 : i32, i32
  }
  func.func @transform_1(%arg0: i32) -> (i32, i32) {
    %c0_i32 = arith.constant 0 : i32
    %c0_i32_0 = arith.constant 0 : i32
    return %arg0, %c0_i32 : i32, i32
  }
}

</mosaic_0001>

<llo_original>
// kernel: tpu_custom_call.1
$region0: #{tpu_custom_call.1}
  #allocation0 [shape = 'u32[]', space=smem, size = 0x4, offset = 0x4, fixed_abs, tag = 'smem constant byte address 0x4 - core index']
  #allocation1 [shape = 'u32[72,128]{1,0:T(1,128)}', space=vmem, size = 0x9000, scoped, tag = 'internal scratch']
  %s0 = inlined_call_operand.hbm [shape: f32[8,256], index: 0, kind: input, shape index: {}]
  %s1 = inlined_call_operand.hbm [shape: f32[8,256], index: 1, kind: output, shape index: {}]
  %s2 = sld [smem:[#allocation0]]
  $region18: #{tpu_custom_call.1} parent=0
    _
  %s4 = ssub.s32 1, %s2
  %s5 = scalar_select 0, %s4, %s2
  $region1: #{tpu_custom_call.1} parent=0
    #allocation2 [shape = 'u8[8192]{0}', space=vmem, size = 0x2000, scoped, tag = 'input window, operand 0, single buffered']
    #allocation3 [shape = 's32[1]{0}', space=sflag, size = 0x4, scoped, tag = 'scoped memory for tpu_custom_call.1']
    #allocation4 [shape = 's32[1]{0}', space=sflag, size = 0x4, scoped, tag = 'scoped memory for tpu_custom_call.1']
    #allocation5 [shape = 'u8[8192]{0}', space=vmem, size = 0x2000, scoped, tag = 'output window, operand 0, single buffered']
    %6 = vsyncpa [#allocation3], 0
    %7 = vsyncpa [#allocation4], 0
    // Predicated region
    $region2: #{tpu_custom_call.1} parent=1 // pred_check
      _
    $region3: #{tpu_custom_call.1} parent=1 // pred_check_branch
      %9 = sbr.rel (0) target = $region5
    $region4: #{tpu_custom_call.1} parent=1 // pred_region
      %11 = vsyncadd [#allocation3], 0
      %s13 = sshll.u32 %s0, 4
      %s14 = int_to_ptr.hbm [resolvable:$true] %s13
      %s15 = sshll.u32 [#allocation2], 4
      %s16 = int_to_ptr.vmem [resolvable:$true] %s15
      %18 = dma.hbm_to_vmem [thread:$0]  %s14, 256, %s16, [#allocation3]
    $region5: #{tpu_custom_call.1} parent=1 // pred_fallthru
      _
    // Predicated region
    $region6: #{tpu_custom_call.1} parent=1 // pred_check
      _
    $region7: #{tpu_custom_call.1} parent=1 // pred_check_branch
      %20 = sbr.rel (0) target = $region9
    $region8: #{tpu_custom_call.1} parent=1 // pred_region
      %22 = dma.done [#allocation3], 256
    $region9: #{tpu_custom_call.1} parent=1 // pred_fallthru
      _
    %v23 = vld [vmem:[#allocation2] sm:$0xff]
    %v24 = vld [vmem:[#allocation2 + $0x8] sm:$0xff]
    %v25 = vrcp.pop 255.0
    %v26 = vmul.f32 255.0, %v25
    %v27 = vsub.f32 1.0, %v26
    %v28 = vmul.f32 %v25, %v27
    %v29 = vadd.f32 %v25, %v28
    %vm30 = vweird.f32 %v25
    %v31 = vsel %vm30, %v25, %v29
    %v32 = vmul.f32 %v23, %v31
    %v33 = vmul.f32 %v24, %v31
    %v34 = vmul.f32 %v32, 2.0
    %v35 = vmul.f32 %v33, 2.0
    %v36 = vsub.f32 %v34, 1.0
    %v37 = vsub.f32 %v35, 1.0
    %38 = vst [vmem:[#allocation5] sm:$0xff] %v36
    %39 = vst [vmem:[#allocation5 + $0x8] sm:$0xff] %v37
    // Predicated region
    $region10: #{tpu_custom_call.1} parent=1 // pred_check
      _
    $region11: #{tpu_custom_call.1} parent=1 // pred_check_branch
      %41 = sbr.rel (0) target = $region13
    $region12: #{tpu_custom_call.1} parent=1 // pred_region
      %43 = vsyncadd [#allocation4], 0
      %s45 = sshll.u32 [#allocation5], 4
      %s46 = int_to_ptr.vmem [resolvable:$true] %s45
      %s47 = sshll.u32 %s1, 4
      %s48 = int_to_ptr.hbm [resolvable:$true] %s47
      %50 = dma.vmem_to_hbm [thread:$0]  %s46, 256, %s48, [#allocation4]
    $region13: #{tpu_custom_call.1} parent=1 // pred_fallthru
      _
    // Predicated region
    $region14: #{tpu_custom_call.1} parent=1 // pred_check
      _
    $region15: #{tpu_custom_call.1} parent=1 // pred_check_branch
      %52 = sbr.rel (0) target = $region17
    $region16: #{tpu_custom_call.1} parent=1 // pred_region
      %54 = dma.done [#allocation4], 256
    $region17: #{tpu_custom_call.1} parent=1 // pred_fallthru
      _
    %55 = vsyncpa [#allocation3], 1
    %56 = vsyncpa [#allocation4], 1

</llo_original>
